<compile_context>
chip_gen: v5e
topology: v5e:2x2
jax: 0.10.0
libtpu: 0.0.40
codegen_flags: <defaults>
</compile_context>

<pallas_src>
import functools

import jax
import jax.numpy as jnp
from jax.experimental import pallas as pl
from jax.experimental.pallas import tpu as pltpu


def head_kernel(x_ref, w_ref, o_ref, *, n_batch, seq_len, head_size):
    # x_ref: (Bb, T, C)   block of batch elements
    # w_ref: (C, 3*H)     fused [Wq*scale | Wk | Wv] weights (no zero padding)
    # o_ref: (Bb, T, H)   output at its true head width
    mm_dtype = x_ref.dtype  # MXU operands stay in the input dtype (bf16-native on v6e/v7x)
    h = head_size

    if seq_len % 8 == 0:
        # Row-packed projection: one (Bb*T, C) @ (C, 3*H) MXU matmul, f32 accumulation.
        # Collapsing the leading dims is layout-free because T is sublane-aligned.
        x2d = x_ref[...].reshape(n_batch * seq_len, -1)
        qkv = jnp.dot(x2d, w_ref[...], preferred_element_type=jnp.float32)
        qkv = qkv.reshape(n_batch, seq_len, 3 * h)
    else:
        # Unaligned T: keep the batch axis so no sublane relayout is introduced.
        qkv = jnp.einsum("btc,cn->btn", x_ref[...], w_ref[...],
                         preferred_element_type=jnp.float32)

    q = qkv[..., :h].astype(mm_dtype)
    k = qkv[..., h:2 * h].astype(mm_dtype)
    v = qkv[..., 2 * h:].astype(mm_dtype)

    # Attention scores; the 1/sqrt(head_size) scale is already folded into Wq.
    s = jnp.einsum("bqd,bkd->bqk", q, k,
                   preferred_element_type=jnp.float32)               # (Bb, T, T) f32

    # Numerically stable softmax over the key axis (f32 math, EUP reciprocal).
    s = s - jnp.max(s, axis=-1, keepdims=True)
    p = jnp.exp(s)
    p = p * pl.reciprocal(jnp.sum(p, axis=-1, keepdims=True), approx=True)

    # nn.Dropout on the attention weights is identity in eval/inference mode.
    # TODO(synk): training-mode dropout would use pltpu.prng_seed + prng_random_bits.

    out = jnp.einsum("bqk,bkd->bqd", p.astype(mm_dtype), v,
                     preferred_element_type=jnp.float32)             # (Bb, T, H)
    o_ref[...] = out.astype(o_ref.dtype)


def prepare_head_params(wq_t, wk_t, wv_t, dtype):
    """Build the fused (C, 3*H) [Wq*scale | Wk | Wv] slab once at param-prep time.

    w*_t are the transposed nn.Linear weights, shape (n_embed, head_size).
    The 1/sqrt(head_size) softmax scale is folded into the Q block, and the slab is
    cast to the activation dtype so the projection is a single-precision MXU path.
    """
    head_size = wq_t.shape[1]
    scale = head_size ** (-0.5)
    return jnp.concatenate([wq_t * scale, wk_t, wv_t], axis=1).astype(dtype)


def head_forward(x, w_qkv):
    """x: (B, T, C); w_qkv: (C, 3*H) from prepare_head_params. Returns (B, T, H)."""
    B, T, C = x.shape
    H = w_qkv.shape[1] // 3

    # Batch elements per grid step: pack bb*T toward ~256 rows (MXU M dim, fewest
    # ~0.35us grid steps — what single-TC v5e/v6e want).  Keep a >=2-step "parallel"
    # grid (v7x: 2 TensorCores) only when it does not drop bb*T below ~128.
    bb = max(1, min(B, max(1, 256 // max(T, 1))))
    while B % bb:
        bb -= 1
    if B // bb < 2:
        for cand in range(bb - 1, 0, -1):
            if B % cand == 0 and B // cand >= 2 and cand * T >= 128:
                bb = cand
                break
    grid = (B // bb,)

    # Conservative per-step VMEM estimate -> vmem_limit_bytes (capped at v7x's 64 MiB
    # physical VMEM; floor at 16 MiB so small shapes stay within every default).
    itemsize = jnp.dtype(x.dtype).itemsize
    rows = bb * T
    vmem_est = (
        2 * rows * C * itemsize          # x block (double-buffered)
        + C * 3 * H * itemsize           # weight slab (single-buffered, invariant)
        + 2 * rows * H * itemsize        # output block (double-buffered)
        + rows * 3 * H * (4 + itemsize)  # f32 qkv + mm-dtype q/k/v copies
        + 2 * bb * T * T * 4             # f32 scores + probs
        + rows * H * 4                   # f32 PV accumulator
    )
    vmem_limit = int(min(max(2 * vmem_est, 16 * 1024 * 1024), 64 * 1024 * 1024))

    return pl.pallas_call(
        functools.partial(head_kernel, n_batch=bb, seq_len=T, head_size=H),
        out_shape=jax.ShapeDtypeStruct((B, T, H), x.dtype),
        grid_spec=pltpu.PrefetchScalarGridSpec(
            num_scalar_prefetch=0,
            grid=grid,
            in_specs=[
                pl.BlockSpec((bb, T, C), lambda b: (b, 0, 0)),
                # Grid-invariant weights: constant index_map, single-buffered.
                pl.BlockSpec((C, 3 * H), lambda b: (0, 0),
                             pipeline_mode=pl.Buffered(1)),
            ],
            out_specs=pl.BlockSpec((bb, T, H), lambda b: (b, 0, 0)),
        ),
        compiler_params=pltpu.CompilerParams(
            dimension_semantics=("parallel",),
            vmem_limit_bytes=vmem_limit,
        ),
    )(x, w_qkv)


def head_reference(x, wq_t, wk_t, wv_t):
    """Pure-JAX reference mirroring the PyTorch forward."""
    q = x @ wq_t
    k = x @ wk_t
    v = x @ wv_t
    w = (q @ jnp.swapaxes(k, -2, -1)) * (k.shape[-1] ** -0.5)
    w = jax.nn.softmax(w, axis=-1)
    return w @ v


if __name__ == "__main__":
    # Small shapes consistent with the module's forward: (batch, seq, n_embed)
    B, T, n_embed, head_size = 2, 8, 32, 16
    key = jax.random.PRNGKey(0)
    kx, kq, kk, kv = jax.random.split(key, 4)

    x = jax.random.normal(kx, (B, T, n_embed), dtype=jnp.float32)

    # nn.Linear(n_embed, head_size, bias=False).weight has shape (head_size, n_embed);
    # forward is x @ weight.T, so we build/pass the transposed (n_embed, head_size) form.
    bound = 1.0 / (n_embed ** 0.5)  # matches torch's default uniform init range
    wq_t = jax.random.uniform(kq, (n_embed, head_size), jnp.float32, -bound, bound)
    wk_t = jax.random.uniform(kk, (n_embed, head_size), jnp.float32, -bound, bound)
    wv_t = jax.random.uniform(kv, (n_embed, head_size), jnp.float32, -bound, bound)

    # Fused weight slab is built ONCE at parameter-prep time (not per forward call).
    w_qkv = prepare_head_params(wq_t, wk_t, wv_t, x.dtype)

    out = head_forward(x, w_qkv)
    out = jax.block_until_ready(out)

    ref = head_reference(x, wq_t, wk_t, wv_t)
    assert out.shape == (B, T, head_size)
    # Slightly looser tolerance: softmax denominator uses the EUP approximate
    # reciprocal (pl.reciprocal(approx=True)).
    assert jnp.allclose(out, ref, atol=2e-3, rtol=2e-3), "mismatch vs reference"

    print("KERNEL_OK")
</pallas_src>

<mosaic_0001>
module attributes {stable_mosaic.version = 11 : i64} {
  func.func @head_kernel(%arg0: i32, %arg1: memref<2x8x32xf32, #tpu.memory_space<vmem>>, %arg2: memref<32x48xf32, #tpu.memory_space<vmem>>, %arg3: memref<2x8x16xf32, #tpu.memory_space<vmem>>) attributes {dimension_semantics = [#tpu.dimension_semantics<parallel>], iteration_bounds = array<i64: 1>, scalar_prefetch = 0 : i64, scratch_operands = 0 : i64, tpu.core_type = #tpu.core_type<tc>, window_params = [{transform_indices = @transform_0, window_bounds = array<i64: 2, 8, 32>}, {pipeline_mode = #tpu.pipeline_mode<synchronous>, transform_indices = @transform_1, window_bounds = array<i64: 32, 48>}, {transform_indices = @transform_2, window_bounds = array<i64: 2, 8, 16>}]} {
    %c0 = arith.constant 0 : index
    %c0_0 = arith.constant 0 : index
    %c0_1 = arith.constant 0 : index
    %0 = vector.load %arg1[%c0, %c0_0, %c0_1] : memref<2x8x32xf32, #tpu.memory_space<vmem>>, vector<2x8x32xf32>
    %1 = vector.shape_cast %0 : vector<2x8x32xf32> to vector<16x32xf32>
    %c0_2 = arith.constant 0 : index
    %c0_3 = arith.constant 0 : index
    %2 = vector.load %arg2[%c0_2, %c0_3] : memref<32x48xf32, #tpu.memory_space<vmem>>, vector<32x48xf32>
    %cst = arith.constant dense<0.000000e+00> : vector<16x48xf32>
    %3 = tpu.matmul %1, %2, %cst {dimension_numbers = #tpu.dot_dimension_numbers<[1], [0], [0], [1], [0, 0, 1, 1], [], []>} : vector<16x32xf32>, vector<32x48xf32>, vector<16x48xf32> -> vector<16x48xf32>
    %4 = vector.shape_cast %3 : vector<16x48xf32> to vector<2x8x48xf32>
    %5 = vector.extract_strided_slice %4 {offsets = [0, 0, 0], sizes = [2, 8, 16], strides = [1, 1, 1]} : vector<2x8x48xf32> to vector<2x8x16xf32>
    %6 = vector.extract_strided_slice %4 {offsets = [0, 0, 16], sizes = [2, 8, 16], strides = [1, 1, 1]} : vector<2x8x48xf32> to vector<2x8x16xf32>
    %7 = vector.extract_strided_slice %4 {offsets = [0, 0, 32], sizes = [2, 8, 16], strides = [1, 1, 1]} : vector<2x8x48xf32> to vector<2x8x16xf32>
    "tpu.trace_start"() <{level = 10 : i32, message = "bqd,bkd->bqk"}> : () -> ()
    %cst_4 = arith.constant dense<0.000000e+00> : vector<2x8x8xf32>
    %8 = tpu.matmul %5, %6, %cst_4 {dimension_numbers = #tpu.dot_dimension_numbers<[2], [2], [1], [1], [0, 0, 0, 1, 1, 1], [0], [0]>} : vector<2x8x16xf32>, vector<2x8x16xf32>, vector<2x8x8xf32> -> vector<2x8x8xf32>
    "tpu.trace_stop"() : () -> ()
    %cst_5 = arith.constant dense<0xFF800000> : vector<2x8xf32>
    %9 = vector.multi_reduction <maximumf>, %8, %cst_5 [2] : vector<2x8x8xf32> to vector<2x8xf32>
    %10 = vector.shape_cast %9 : vector<2x8xf32> to vector<2x8x1xf32>
    %11 = vector.broadcast %10 : vector<2x8x1xf32> to vector<2x8x8xf32>
    %12 = arith.subf %8, %11 : vector<2x8x8xf32>
    %13 = math.exp %12 : vector<2x8x8xf32>
    %cst_6 = arith.constant dense<0.000000e+00> : vector<2x8xf32>
    %14 = vector.multi_reduction <add>, %13, %cst_6 [2] : vector<2x8x8xf32> to vector<2x8xf32>
    %15 = vector.shape_cast %14 : vector<2x8xf32> to vector<2x8x1xf32>
    %16 = tpu.reciprocal %15 {approx = true} : vector<2x8x1xf32> -> vector<2x8x1xf32>
    %17 = vector.broadcast %16 : vector<2x8x1xf32> to vector<2x8x8xf32>
    %18 = arith.mulf %13, %17 : vector<2x8x8xf32>
    "tpu.trace_start"() <{level = 10 : i32, message = "bqk,bkd->bqd"}> : () -> ()
    %cst_7 = arith.constant dense<0.000000e+00> : vector<2x8x16xf32>
    %19 = tpu.matmul %18, %7, %cst_7 {dimension_numbers = #tpu.dot_dimension_numbers<[2], [1], [1], [2], [0, 0, 0, 1, 1, 2], [0], [0]>} : vector<2x8x8xf32>, vector<2x8x16xf32>, vector<2x8x16xf32> -> vector<2x8x16xf32>
    "tpu.trace_stop"() : () -> ()
    %c0_8 = arith.constant 0 : index
    %c0_9 = arith.constant 0 : index
    %c0_10 = arith.constant 0 : index
    %20 = vector.load %arg3[%c0_8, %c0_9, %c0_10] : memref<2x8x16xf32, #tpu.memory_space<vmem>>, vector<2x8x16xf32>
    tpu.vector_store %arg3[%c0_8, %c0_9, %c0_10], %19 {strides = array<i32>} : memref<2x8x16xf32, #tpu.memory_space<vmem>>, vector<2x8x16xf32>,
    return
  }
  func.func @transform_0(%arg0: i32) -> (i32, i32, i32) {
    %c0_i32 = arith.constant 0 : i32
    %c0_i32_0 = arith.constant 0 : i32
    %c0_i32_1 = arith.constant 0 : i32
    return %arg0, %c0_i32, %c0_i32_0 : i32, i32, i32
  }
  func.func @transform_1(%arg0: i32) -> (i32, i32) {
    %c0_i32 = arith.constant 0 : i32
    %c0_i32_0 = arith.constant 0 : i32
    %c0_i32_1 = arith.constant 0 : i32
    return %c0_i32, %c0_i32_0 : i32, i32
  }
  func.func @transform_2(%arg0: i32) -> (i32, i32, i32) {
    %c0_i32 = arith.constant 0 : i32
    %c0_i32_0 = arith.constant 0 : i32
    %c0_i32_1 = arith.constant 0 : i32
    return %arg0, %c0_i32, %c0_i32_0 : i32, i32, i32
  }
}

</mosaic_0001>

<llo_original>
// kernel: tpu_custom_call.1
$region0: #{tpu_custom_call.1}
  #allocation0 [shape = 'u32[]', space=smem, size = 0x4, offset = 0x4, fixed_abs, tag = 'smem constant byte address 0x4 - core index']
  #allocation1 [shape = 'u32[72,128]{1,0:T(1,128)}', space=vmem, size = 0x9000, scoped, tag = 'internal scratch']
  %s0 = inlined_call_operand.hbm [shape: f32[2,8,32], index: 0, kind: input, shape index: {}]
  %s1 = inlined_call_operand.hbm [shape: f32[32,48], index: 1, kind: input, shape index: {}]
  %s2 = inlined_call_operand.hbm [shape: f32[2,8,16], index: 2, kind: output, shape index: {}]
  %s3 = sld [smem:[#allocation0]]
  $region26: #{tpu_custom_call.1} parent=0
    _
  %s5 = ssub.s32 1, %s3
  %s6 = scalar_select 0, %s5, %s3
  $region1: #{tpu_custom_call.1} parent=0
    #allocation2 [shape = 'u8[8192]{0}', space=vmem, size = 0x2000, scoped, tag = 'input window, operand 0, single buffered']
    #allocation3 [shape = 's32[1]{0}', space=sflag, size = 0x4, scoped, tag = 'scoped memory for tpu_custom_call.1']
    #allocation4 [shape = 's32[1]{0}', space=sflag, size = 0x4, scoped, tag = 'scoped memory for tpu_custom_call.1']
    #allocation5 [shape = 'u8[16384]{0}', space=vmem, size = 0x4000, scoped, tag = 'input window, operand 1, single buffered']
    #allocation6 [shape = 's32[1]{0}', space=sflag, size = 0x4, scoped, tag = 'scoped memory for tpu_custom_call.1']
    #allocation7 [shape = 'u8[8192]{0}', space=vmem, size = 0x2000, scoped, tag = 'output window, operand 0, single buffered']
    %7 = vsyncpa [#allocation3], 0
    %8 = vsyncpa [#allocation6], 0
    %9 = vsyncpa [#allocation4], 0
    // Predicated region
    $region2: #{tpu_custom_call.1} parent=1 // pred_check
      _
    $region3: #{tpu_custom_call.1} parent=1 // pred_check_branch
      %11 = sbr.rel (0) target = $region5
    $region4: #{tpu_custom_call.1} parent=1 // pred_region
      %13 = vsyncadd [#allocation3], 0
      %s14 = sshll.u32 %s0, 4
      %s15 = int_to_ptr.hbm [resolvable:$true] %s14
      %s16 = sshll.u32 [#allocation2], 4
      %s17 = int_to_ptr.vmem [resolvable:$true] %s16
      %22 = dma.hbm_to_vmem [thread:$0]  %s15, 256, %s17, [#allocation3], 128, 128, 8
    $region5: #{tpu_custom_call.1} parent=1 // pred_fallthru
      _
    // Predicated region
    $region6: #{tpu_custom_call.1} parent=1 // pred_check
      _
    $region7: #{tpu_custom_call.1} parent=1 // pred_check_branch
      %24 = sbr.rel (0) target = $region9
    $region8: #{tpu_custom_call.1} parent=1 // pred_region
      %26 = vsyncadd [#allocation6], 0
      %s27 = sshll.u32 %s1, 4
      %s28 = int_to_ptr.hbm [resolvable:$true] %s27
      %s29 = sshll.u32 [#allocation5], 4
      %s30 = int_to_ptr.vmem [resolvable:$true] %s29
      %35 = dma.hbm_to_vmem [thread:$0]  %s28, 512, %s30, [#allocation6], 128, 128, 8
    $region9: #{tpu_custom_call.1} parent=1 // pred_fallthru
      _
    // Predicated region
    $region10: #{tpu_custom_call.1} parent=1 // pred_check
      _
    $region11: #{tpu_custom_call.1} parent=1 // pred_check_branch
      %37 = sbr.rel (0) target = $region13
    $region12: #{tpu_custom_call.1} parent=1 // pred_region
      %39 = dma.done [#allocation3], 256
    $region13: #{tpu_custom_call.1} parent=1 // pred_fallthru
      _
    // Predicated region
    $region14: #{tpu_custom_call.1} parent=1 // pred_check
      _
    $region15: #{tpu_custom_call.1} parent=1 // pred_check_branch
      %41 = sbr.rel (0) target = $region17
    $region16: #{tpu_custom_call.1} parent=1 // pred_region
      %43 = dma.done [#allocation6], 512
    $region17: #{tpu_custom_call.1} parent=1 // pred_fallthru
      _
    %v44 = vld [vmem:[#allocation2] sm:$0xff]
    %v45 = vld [vmem:[#allocation2 + $0x8] sm:$0xff]
    %v46 = vld [vmem:[#allocation5] sm:$0xff]
    %v47 = vld [vmem:[#allocation5 + $0x8] sm:$0xff]
    %v48 = vld [vmem:[#allocation5 + $0x10] sm:$0xff]
    %v49 = vld [vmem:[#allocation5 + $0x18] sm:$0xff]
    %vm50 = vcmask 261120
    %v52 = vsel %vm50, %v44, 0
    %v55 = vsel %vm50, %v45, 0
    %57 = vmatpush.msra.mxu0 0.0
    %58 = vmatpush.msra.mxu0 0.0
    %59 = vmatpush.msra.mxu0 0.0
    %60 = vmatpush.msra.mxu0 0.0
    %61 = vmatpush.msra.mxu0 0.0
    %62 = vmatpush.msra.mxu0 0.0
    %63 = vmatpush.msra.mxu0 0.0
    %64 = vmatpush.msra.mxu0 0.0
    %65 = vmatpush.msra.mxu0 0.0
    %66 = vmatpush.msra.mxu0 0.0
    %67 = vmatpush.msra.mxu0 0.0
    %68 = vmatpush.msra.mxu0 0.0
    %69 = vmatpush.msra.mxu0 %v49
    %70 = vmatpush.msra.mxu0 %v48
    %71 = vmatpush.msra.mxu0 %v47
    %72 = vmatpush.msra.mxu0 %v46
    %73 = vmatmul.f32.gmra.mxu0 %v52
    %v74 = vpop.f32.mrf.mxu0
    %v75 = vadd.f32 0.0, %v74
    %76 = vmatmul.f32.gmra.mxu0 %v55
    %v77 = vpop.f32.mrf.mxu0
    %v78 = vadd.f32 0.0, %v77
    %79 = vdwg.mxu0
    %81 = vrot.lane.b32.xlu0 %v75, 112
    %v82 = vpop.permute.xlu0 %81
    %vm83 = vcmask 130048
    %v84 = vsel %vm83, %v75, 0
    %v86 = vsel %vm83, %v82, 0
    %88 = vmatpush.xpose.msra.mxu0 0.0
    %89 = vmatpush.xpose.msra.mxu0 0.0
    %90 = vmatpush.xpose.msra.mxu0 0.0
    %91 = vmatpush.xpose.msra.mxu0 0.0
    %92 = vmatpush.xpose.msra.mxu0 0.0
    %93 = vmatpush.xpose.msra.mxu0 0.0
    %94 = vmatpush.xpose.msra.mxu0 0.0
    %95 = vmatpush.xpose.msra.mxu0 0.0
    %96 = vmatpush.xpose.msra.mxu0 0.0
    %97 = vmatpush.xpose.msra.mxu0 0.0
    %98 = vmatpush.xpose.msra.mxu0 0.0
    %99 = vmatpush.xpose.msra.mxu0 0.0
    %100 = vmatpush.xpose.msra.mxu0 0.0
    %101 = vmatpush.xpose.msra.mxu0 0.0
    %102 = vmatpush.xpose.msra.mxu0 0.0
    %103 = vmatpush.xpose.msra.mxu0 %v86
    %104 = vmatmul.f32.gmra.mxu0 %v84
    %v105 = vpop.f32.mrf.mxu0
    %v106 = vadd.f32 0.0, %v105
    %107 = vdwg.mxu0
    %109 = vrot.lane.b32.xlu0 %v78, 112
    %v110 = vpop.permute.xlu0 %109
    %v111 = vsel %vm83, %v78, 0
    %v113 = vsel %vm83, %v110, 0
    %115 = vmatpush.xpose.msra.mxu0 0.0
    %116 = vmatpush.xpose.msra.mxu0 0.0
    %117 = vmatpush.xpose.msra.mxu0 0.0
    %118 = vmatpush.xpose.msra.mxu0 0.0
    %119 = vmatpush.xpose.msra.mxu0 0.0
    %120 = vmatpush.xpose.msra.mxu0 0.0
    %121 = vmatpush.xpose.msra.mxu0 0.0
    %122 = vmatpush.xpose.msra.mxu0 0.0
    %123 = vmatpush.xpose.msra.mxu0 0.0
    %124 = vmatpush.xpose.msra.mxu0 0.0
    %125 = vmatpush.xpose.msra.mxu0 0.0
    %126 = vmatpush.xpose.msra.mxu0 0.0
    %127 = vmatpush.xpose.msra.mxu0 0.0
    %128 = vmatpush.xpose.msra.mxu0 0.0
    %129 = vmatpush.xpose.msra.mxu0 0.0
    %130 = vmatpush.xpose.msra.mxu0 %v113
    %131 = vmatmul.f32.gmra.mxu0 %v111
    %v132 = vpop.f32.mrf.mxu0
    %v133 = vadd.f32 0.0, %v132
    %134 = vdwg.mxu0
    %vm135 = vcmask 64512
    %v136 = vsel %vm135, %v106, -inf
    %137 = vmax.xlane.f32.xlu0 %v136
    %v138 = vpop.xlane.xlu0 %137
    %v139 = vsel %vm135, %v133, -inf
    %140 = vmax.xlane.f32.xlu0 %v139
    %v141 = vpop.xlane.xlu0 %140
    %v142 = vsub.f32 %v106, %v138
    %v143 = vsub.f32 %v133, %v141
    %v144 = vmul.f32 %v142, 1.442695
    %v145 = vpow.pop %v144
    %v146 = vmul.f32 %v143, 1.442695
    %v147 = vpow.pop %v146
    %v148 = vsel %vm135, %v145, 0.0
    %149 = vadd.xlane.f32.xlu0 %v148
    %v150 = vpop.xlane.xlu0 %149
    %v151 = vsel %vm135, %v147, 0.0
    %152 = vadd.xlane.f32.xlu0 %v151
    %v153 = vpop.xlane.xlu0 %152
    %v154 = vrcp.pop %v150
    %v155 = vrcp.pop %v153
    %v156 = vmul.f32 %v145, %v154
    %v157 = vmul.f32 %v147, %v155
    %158 = vrot.lane.b32.xlu0 %v75, 96
    %v159 = vpop.permute.xlu0 %158
    %v162 = vsel %vm135, %v156, 0
    %164 = vmatpush.msra.mxu0 0.0
    %165 = vmatpush.msra.mxu0 0.0
    %166 = vmatpush.msra.mxu0 0.0
    %167 = vmatpush.msra.mxu0 0.0
    %168 = vmatpush.msra.mxu0 0.0
    %169 = vmatpush.msra.mxu0 0.0
    %170 = vmatpush.msra.mxu0 0.0
    %171 = vmatpush.msra.mxu0 0.0
    %172 = vmatpush.msra.mxu0 0.0
    %173 = vmatpush.msra.mxu0 0.0
    %174 = vmatpush.msra.mxu0 0.0
    %175 = vmatpush.msra.mxu0 0.0
    %176 = vmatpush.msra.mxu0 0.0
    %177 = vmatpush.msra.mxu0 0.0
    %178 = vmatpush.msra.mxu0 0.0
    %179 = vmatpush.msra.mxu0 %v159
    %180 = vmatmul.f32.gmra.mxu0 %v162
    %v181 = vpop.f32.mrf.mxu0
    %v182 = vadd.f32 0.0, %v181
    %183 = vdwg.mxu0
    %184 = vrot.lane.b32.xlu0 %v78, 96
    %v185 = vpop.permute.xlu0 %184
    %v188 = vsel %vm135, %v157, 0
    %190 = vmatpush.msra.mxu0 0.0
    %191 = vmatpush.msra.mxu0 0.0
    %192 = vmatpush.msra.mxu0 0.0
    %193 = vmatpush.msra.mxu0 0.0
    %194 = vmatpush.msra.mxu0 0.0
    %195 = vmatpush.msra.mxu0 0.0
    %196 = vmatpush.msra.mxu0 0.0
    %197 = vmatpush.msra.mxu0 0.0
    %198 = vmatpush.msra.mxu0 0.0
    %199 = vmatpush.msra.mxu0 0.0
    %200 = vmatpush.msra.mxu0 0.0
    %201 = vmatpush.msra.mxu0 0.0
    %202 = vmatpush.msra.mxu0 0.0
    %203 = vmatpush.msra.mxu0 0.0
    %204 = vmatpush.msra.mxu0 0.0
    %205 = vmatpush.msra.mxu0 %v185
    %206 = vmatmul.f32.gmra.mxu0 %v188
    %v207 = vpop.f32.mrf.mxu0
    %v208 = vadd.f32 0.0, %v207
    %209 = vdwg.mxu0
    %210 = vst.msk [vmem:[#allocation7] sm:$0xff] %vm83, %v182
    %211 = vst.msk [vmem:[#allocation7 + $0x8] sm:$0xff] %vm83, %v208
    // Predicated region
    $region18: #{tpu_custom_call.1} parent=1 // pred_check
      _
    $region19: #{tpu_custom_call.1} parent=1 // pred_check_branch
      %213 = sbr.rel (0) target = $region21
    $region20: #{tpu_custom_call.1} parent=1 // pred_region
      %215 = vsyncadd [#allocation4], 0
      %s216 = sshll.u32 [#allocation7], 4
      %s217 = int_to_ptr.vmem [resolvable:$true] %s216
      %s218 = sshll.u32 %s2, 4
      %s219 = int_to_ptr.hbm [resolvable:$true] %s218
      %224 = dma.vmem_to_hbm [thread:$0]  %s217, 256, %s219, [#allocation4], 128, 128, 8
    $region21: #{tpu_custom_call.1} parent=1 // pred_fallthru
      _
    // Predicated region
    $region22: #{tpu_custom_call.1} parent=1 // pred_check
      _
    $region23: #{tpu_custom_call.1} parent=1 // pred_check_branch
      %226 = sbr.rel (0) target = $region25
    $region24: #{tpu_custom_call.1} parent=1 // pred_region
      %228 = dma.done [#allocation4], 256
    $region25: #{tpu_custom_call.1} parent=1 // pred_fallthru
      _
    %229 = vsyncpa [#allocation3], 1
    %230 = vsyncpa [#allocation6], 1
    %231 = vsyncpa [#allocation4], 1

</llo_original>
